<compile_context>
chip_gen: v6e
topology: v6e:2x2x1
jax: 0.10.0
libtpu: 0.0.40
codegen_flags: <defaults>
</compile_context>

<pallas_src>
import jax
import jax.numpy as jnp
from jax.experimental import pallas as pl
from jax.experimental.pallas import tpu as pltpu

# OurActFunc hyper-parameters from the module __init__
DELTA_T = 0.43
SAT_I = 9.62
NS_T = 0.47
_INV_SAT_I = 1.0 / SAT_I
_ONE_MINUS_NS_T = 1.0 - NS_T

_NUM_CLASSES = 10


def _our_act(x):
    # TODO(synk): OurActFunc source not provided; implemented as the standard
    # saturable-absorber transmission y = x * (1 - delta_T/(1 + x/sat_I) - ns_T).
    transmission = _ONE_MINUS_NS_T - DELTA_T * pl.reciprocal(
        1.0 + x * _INV_SAT_I, approx=True)
    return x * transmission


def _mlp_kernel(x_ref, w1_ref, b1_ref, w2_ref, b2_ref, w3_ref, b3_ref, out_ref):
    # x arrives in f32; cast the tile to bf16 here (hidden under DMA/MXU).
    x = x_ref[...].astype(jnp.bfloat16)                                # (TB, 784)

    h1 = jnp.dot(x, w1_ref[...], preferred_element_type=jnp.float32)  # (TB, 128) f32
    h1 = h1 + b1_ref[...]
    a1 = _our_act(h1)

    h2 = jnp.dot(a1.astype(jnp.bfloat16), w2_ref[...],
                 preferred_element_type=jnp.float32)                   # (TB, 64) f32
    h2 = h2 + b2_ref[...]
    a2 = _our_act(h2)

    logits = jnp.dot(a2.astype(jnp.bfloat16), w3_ref[...],
                     preferred_element_type=jnp.float32)               # (TB, 10) f32
    logits = logits + b3_ref[...]

    # log_softmax over the class axis (all f32).
    m = jnp.max(logits, axis=-1, keepdims=True)
    shifted = logits - m
    lse = jnp.log(jnp.sum(jnp.exp(shifted), axis=-1, keepdims=True))
    out_ref[...] = shifted - lse


def _round_up(n, m):
    return ((n + m - 1) // m) * m


def _choose_tile_b(b, block_b):
    """Pick a batch tile: multiple of 8, large, but >= 2 tiles when possible."""
    if b <= 8:
        return b  # block dim == full array dim (no (8,128) issue, no OOB rows)
    tb = min(block_b, _round_up(b, 8))
    # v7x megacore: keep at least 2 batch tiles so ("parallel",) shards both TCs.
    tb = min(tb, _round_up(pl.cdiv(b, 2), 8))
    return max(8, tb)


def prepare_params(params):
    """One-time parameter prep (hoisted out of the per-call forward path)."""
    w1, b1, w2, b2, w3, b3 = params
    return (w1.astype(jnp.bfloat16), b1.astype(jnp.float32).reshape(1, -1),
            w2.astype(jnp.bfloat16), b2.astype(jnp.float32).reshape(1, -1),
            w3.astype(jnp.bfloat16), b3.astype(jnp.float32).reshape(1, -1))


def fcnet_our3_forward(x_nchw, prepared_params, block_b=1024):
    """x_nchw: (B, 1, 28, 28) float32 -> (B, 10) f32 log-probabilities."""
    b = x_nchw.shape[0]
    x = x_nchw.reshape(b, -1)          # torch.flatten(x, 1); free under jit
    k_in = x.shape[1]
    w1, b1, w2, b2, w3, b3 = prepared_params
    n_out = w3.shape[1]

    tb = _choose_tile_b(b, block_b)
    grid = (pl.cdiv(b, tb),)
    const = lambda i: (0, 0)           # weights/biases resident across grid steps

    out = pl.pallas_call(
        _mlp_kernel,
        out_shape=jax.ShapeDtypeStruct((b, n_out), jnp.float32),
        grid=grid,
        in_specs=[
            pl.BlockSpec((tb, k_in), lambda i: (i, 0)),      # x tile (f32)
            pl.BlockSpec((k_in, 128), const),                # w1 (bf16)
            pl.BlockSpec((1, 128), const),                   # b1 (f32)
            pl.BlockSpec((128, 64), const),                  # w2 (bf16)
            pl.BlockSpec((1, 64), const),                    # b2 (f32)
            pl.BlockSpec((64, n_out), const),                # w3 (bf16)
            pl.BlockSpec((1, n_out), const),                 # b3 (f32)
        ],
        out_specs=pl.BlockSpec((tb, n_out), lambda i: (i, 0)),
        compiler_params=pltpu.CompilerParams(
            dimension_semantics=("parallel",),
            vmem_limit_bytes=48 * 1024 * 1024),
    )(x, w1, b1, w2, b2, w3, b3)

    return out


def init_params(key):
    """Deterministic PyTorch-Linear-style init. Weights stored as (in, out)."""
    def linear(k, fan_in, fan_out):
        kw, kb = jax.random.split(k)
        bound = 1.0 / jnp.sqrt(fan_in)
        w = jax.random.uniform(kw, (fan_in, fan_out), jnp.float32, -bound, bound)
        b = jax.random.uniform(kb, (1, fan_out), jnp.float32, -bound, bound)
        return w, b

    k1, k2, k3 = jax.random.split(key, 3)
    w1, b1 = linear(k1, 784, 128)
    w2, b2 = linear(k2, 128, 64)
    w3, b3 = linear(k3, 64, _NUM_CLASSES)
    return (w1, b1, w2, b2, w3, b3)


if __name__ == "__main__":
    key = jax.random.PRNGKey(0)
    k_params, k_x = jax.random.split(key)

    params = init_params(k_params)
    prepared = prepare_params(params)      # one-time weight prep (not per call)

    # MNIST-like input: batch=2, NCHW (2, 1, 28, 28) -> flatten -> 784 features
    x = jax.random.normal(k_x, (2, 1, 28, 28), jnp.float32)

    fwd = jax.jit(fcnet_our3_forward)
    out = jax.block_until_ready(fwd(x, prepared))

    assert out.shape == (2, _NUM_CLASSES) and out.dtype == jnp.float32
    # log_softmax rows should (approximately) exponentiate-sum to 1
    assert jnp.allclose(jnp.sum(jnp.exp(out), axis=1), 1.0, atol=1e-3)
    print("KERNEL_OK")
</pallas_src>

<mosaic_0001>
module attributes {stable_mosaic.version = 11 : i64} {
  func.func @_mlp_kernel(%arg0: i32, %arg1: memref<2x784xf32, #tpu.memory_space<vmem>>, %arg2: memref<784x128xbf16, #tpu.memory_space<vmem>>, %arg3: memref<1x128xf32, #tpu.memory_space<vmem>>, %arg4: memref<128x64xbf16, #tpu.memory_space<vmem>>, %arg5: memref<1x64xf32, #tpu.memory_space<vmem>>, %arg6: memref<64x10xbf16, #tpu.memory_space<vmem>>, %arg7: memref<1x10xf32, #tpu.memory_space<vmem>>, %arg8: memref<2x10xf32, #tpu.memory_space<vmem>>) attributes {dimension_semantics = [#tpu.dimension_semantics<parallel>], iteration_bounds = array<i64: 1>, scalar_prefetch = 0 : i64, scratch_operands = 0 : i64, tpu.core_type = #tpu.core_type<tc>, window_params = [{transform_indices = @transform_0, window_bounds = array<i64: 2, 784>}, {pipeline_mode = #tpu.pipeline_mode<synchronous>, transform_indices = @transform_1, window_bounds = array<i64: 784, 128>}, {pipeline_mode = #tpu.pipeline_mode<synchronous>, transform_indices = @transform_2, window_bounds = array<i64: 1, 128>}, {pipeline_mode = #tpu.pipeline_mode<synchronous>, transform_indices = @transform_3, window_bounds = array<i64: 128, 64>}, {pipeline_mode = #tpu.pipeline_mode<synchronous>, transform_indices = @transform_4, window_bounds = array<i64: 1, 64>}, {pipeline_mode = #tpu.pipeline_mode<synchronous>, transform_indices = @transform_5, window_bounds = array<i64: 64, 10>}, {pipeline_mode = #tpu.pipeline_mode<synchronous>, transform_indices = @transform_6, window_bounds = array<i64: 1, 10>}, {transform_indices = @transform_7, window_bounds = array<i64: 2, 10>}]} {
    %c0 = arith.constant 0 : index
    %c0_0 = arith.constant 0 : index
    %0 = vector.load %arg1[%c0, %c0_0] : memref<2x784xf32, #tpu.memory_space<vmem>>, vector<2x784xf32>
    %1 = arith.truncf %0 : vector<2x784xf32> to vector<2x784xbf16>
    %c0_1 = arith.constant 0 : index
    %c0_2 = arith.constant 0 : index
    %2 = vector.load %arg2[%c0_1, %c0_2] : memref<784x128xbf16, #tpu.memory_space<vmem>>, vector<784x128xbf16>
    %cst = arith.constant dense<0.000000e+00> : vector<2x128xf32>
    %3 = tpu.matmul %1, %2, %cst {dimension_numbers = #tpu.dot_dimension_numbers<[1], [0], [0], [1], [0, 0, 1, 1], [], []>} : vector<2x784xbf16>, vector<784x128xbf16>, vector<2x128xf32> -> vector<2x128xf32>
    %c0_3 = arith.constant 0 : index
    %c0_4 = arith.constant 0 : index
    %4 = vector.load %arg3[%c0_3, %c0_4] : memref<1x128xf32, #tpu.memory_space<vmem>>, vector<1x128xf32>
    %5 = vector.broadcast %4 : vector<1x128xf32> to vector<2x128xf32>
    %6 = arith.addf %3, %5 : vector<2x128xf32>
    %cst_5 = arith.constant 0.103950106 : f32
    %7 = vector.broadcast %cst_5 : f32 to vector<2x128xf32>
    %8 = arith.mulf %6, %7 : vector<2x128xf32>
    %cst_6 = arith.constant 1.000000e+00 : f32
    %9 = vector.broadcast %cst_6 : f32 to vector<2x128xf32>
    %10 = arith.addf %9, %8 : vector<2x128xf32>
    %11 = tpu.reciprocal %10 {approx = true} : vector<2x128xf32> -> vector<2x128xf32>
    %cst_7 = arith.constant 4.300000e-01 : f32
    %12 = vector.broadcast %cst_7 : f32 to vector<2x128xf32>
    %13 = arith.mulf %12, %11 : vector<2x128xf32>
    %cst_8 = arith.constant 5.300000e-01 : f32
    %14 = vector.broadcast %cst_8 : f32 to vector<2x128xf32>
    %15 = arith.subf %14, %13 : vector<2x128xf32>
    %16 = arith.mulf %6, %15 : vector<2x128xf32>
    %17 = arith.truncf %16 : vector<2x128xf32> to vector<2x128xbf16>
    %c0_9 = arith.constant 0 : index
    %c0_10 = arith.constant 0 : index
    %18 = vector.load %arg4[%c0_9, %c0_10] : memref<128x64xbf16, #tpu.memory_space<vmem>>, vector<128x64xbf16>
    %cst_11 = arith.constant dense<0.000000e+00> : vector<2x64xf32>
    %19 = tpu.matmul %17, %18, %cst_11 {dimension_numbers = #tpu.dot_dimension_numbers<[1], [0], [0], [1], [0, 0, 1, 1], [], []>} : vector<2x128xbf16>, vector<128x64xbf16>, vector<2x64xf32> -> vector<2x64xf32>
    %c0_12 = arith.constant 0 : index
    %c0_13 = arith.constant 0 : index
    %20 = vector.load %arg5[%c0_12, %c0_13] : memref<1x64xf32, #tpu.memory_space<vmem>>, vector<1x64xf32>
    %21 = vector.broadcast %20 : vector<1x64xf32> to vector<2x64xf32>
    %22 = arith.addf %19, %21 : vector<2x64xf32>
    %cst_14 = arith.constant 0.103950106 : f32
    %23 = vector.broadcast %cst_14 : f32 to vector<2x64xf32>
    %24 = arith.mulf %22, %23 : vector<2x64xf32>
    %cst_15 = arith.constant 1.000000e+00 : f32
    %25 = vector.broadcast %cst_15 : f32 to vector<2x64xf32>
    %26 = arith.addf %25, %24 : vector<2x64xf32>
    %27 = tpu.reciprocal %26 {approx = true} : vector<2x64xf32> -> vector<2x64xf32>
    %cst_16 = arith.constant 4.300000e-01 : f32
    %28 = vector.broadcast %cst_16 : f32 to vector<2x64xf32>
    %29 = arith.mulf %28, %27 : vector<2x64xf32>
    %cst_17 = arith.constant 5.300000e-01 : f32
    %30 = vector.broadcast %cst_17 : f32 to vector<2x64xf32>
    %31 = arith.subf %30, %29 : vector<2x64xf32>
    %32 = arith.mulf %22, %31 : vector<2x64xf32>
    %33 = arith.truncf %32 : vector<2x64xf32> to vector<2x64xbf16>
    %c0_18 = arith.constant 0 : index
    %c0_19 = arith.constant 0 : index
    %34 = vector.load %arg6[%c0_18, %c0_19] : memref<64x10xbf16, #tpu.memory_space<vmem>>, vector<64x10xbf16>
    %cst_20 = arith.constant dense<0.000000e+00> : vector<2x10xf32>
    %35 = tpu.matmul %33, %34, %cst_20 {dimension_numbers = #tpu.dot_dimension_numbers<[1], [0], [0], [1], [0, 0, 1, 1], [], []>} : vector<2x64xbf16>, vector<64x10xbf16>, vector<2x10xf32> -> vector<2x10xf32>
    %c0_21 = arith.constant 0 : index
    %c0_22 = arith.constant 0 : index
    %36 = vector.load %arg7[%c0_21, %c0_22] : memref<1x10xf32, #tpu.memory_space<vmem>>, vector<1x10xf32>
    %37 = vector.broadcast %36 : vector<1x10xf32> to vector<2x10xf32>
    %38 = arith.addf %35, %37 : vector<2x10xf32>
    %cst_23 = arith.constant dense<0xFF800000> : vector<2xf32>
    %39 = vector.multi_reduction <maximumf>, %38, %cst_23 [1] : vector<2x10xf32> to vector<2xf32>
    %40 = vector.shape_cast %39 : vector<2xf32> to vector<2x1xf32>
    %41 = vector.broadcast %40 : vector<2x1xf32> to vector<2x10xf32>
    %42 = arith.subf %38, %41 : vector<2x10xf32>
    %43 = math.exp %42 : vector<2x10xf32>
    %cst_24 = arith.constant dense<0.000000e+00> : vector<2xf32>
    %44 = vector.multi_reduction <add>, %43, %cst_24 [1] : vector<2x10xf32> to vector<2xf32>
    %45 = vector.shape_cast %44 : vector<2xf32> to vector<2x1xf32>
    %46 = math.log %45 : vector<2x1xf32>
    %47 = vector.broadcast %46 : vector<2x1xf32> to vector<2x10xf32>
    %48 = arith.subf %42, %47 : vector<2x10xf32>
    %c0_25 = arith.constant 0 : index
    %c0_26 = arith.constant 0 : index
    %49 = vector.load %arg8[%c0_25, %c0_26] : memref<2x10xf32, #tpu.memory_space<vmem>>, vector<2x10xf32>
    tpu.vector_store %arg8[%c0_25, %c0_26], %48 {strides = array<i32>} : memref<2x10xf32, #tpu.memory_space<vmem>>, vector<2x10xf32>,
    return
  }
  func.func @transform_0(%arg0: i32) -> (i32, i32) {
    %c0_i32 = arith.constant 0 : i32
    %c0_i32_0 = arith.constant 0 : i32
    return %arg0, %c0_i32 : i32, i32
  }
  func.func @transform_1(%arg0: i32) -> (i32, i32) {
    %c0_i32 = arith.constant 0 : i32
    %c0_i32_0 = arith.constant 0 : i32
    %c0_i32_1 = arith.constant 0 : i32
    return %c0_i32, %c0_i32_0 : i32, i32
  }
  func.func @transform_2(%arg0: i32) -> (i32, i32) {
    %c0_i32 = arith.constant 0 : i32
    %c0_i32_0 = arith.constant 0 : i32
    %c0_i32_1 = arith.constant 0 : i32
    return %c0_i32, %c0_i32_0 : i32, i32
  }
  func.func @transform_3(%arg0: i32) -> (i32, i32) {
    %c0_i32 = arith.constant 0 : i32
    %c0_i32_0 = arith.constant 0 : i32
    %c0_i32_1 = arith.constant 0 : i32
    return %c0_i32, %c0_i32_0 : i32, i32
  }
  func.func @transform_4(%arg0: i32) -> (i32, i32) {
    %c0_i32 = arith.constant 0 : i32
    %c0_i32_0 = arith.constant 0 : i32
    %c0_i32_1 = arith.constant 0 : i32
    return %c0_i32, %c0_i32_0 : i32, i32
  }
  func.func @transform_5(%arg0: i32) -> (i32, i32) {
    %c0_i32 = arith.constant 0 : i32
    %c0_i32_0 = arith.constant 0 : i32
    %c0_i32_1 = arith.constant 0 : i32
    return %c0_i32, %c0_i32_0 : i32, i32
  }
  func.func @transform_6(%arg0: i32) -> (i32, i32) {
    %c0_i32 = arith.constant 0 : i32
    %c0_i32_0 = arith.constant 0 : i32
    %c0_i32_1 = arith.constant 0 : i32
    return %c0_i32, %c0_i32_0 : i32, i32
  }
  func.func @transform_7(%arg0: i32) -> (i32, i32) {
    %c0_i32 = arith.constant 0 : i32
    %c0_i32_0 = arith.constant 0 : i32
    return %arg0, %c0_i32 : i32, i32
  }
}

</mosaic_0001>

<llo_original>
// kernel: fcnet_our3_forward.1
$region0: #{fcnet_our3_forward.1}
  #allocation0 [shape = 'u32[]', space=smem, size = 0x4, offset = 0x4, fixed_abs, tag = 'smem constant byte address 0x4 - core index']
  #allocation1 [shape = 'u32[144,128]{1,0:T(1,128)}', space=vmem, size = 0x12000, scoped, tag = 'internal scratch']
  %s0 = inlined_call_operand.vmem [shape: f32[2,784], index: 0, kind: input, shape index: {}]
  %s1 = inlined_call_operand.hbm [shape: bf16[784,128], index: 1, kind: input, shape index: {}]
  %s2 = inlined_call_operand.vmem [shape: f32[1,128], index: 2, kind: input, shape index: {}]
  %s3 = inlined_call_operand.vmem [shape: bf16[128,64], index: 3, kind: input, shape index: {}]
  %s4 = inlined_call_operand.vmem [shape: f32[1,64], index: 4, kind: input, shape index: {}]
  %s5 = inlined_call_operand.vmem [shape: bf16[64,10], index: 5, kind: input, shape index: {}]
  %s6 = inlined_call_operand.vmem [shape: f32[1,10], index: 6, kind: input, shape index: {}]
  %s7 = inlined_call_operand.hbm [shape: f32[2,10], index: 7, kind: output, shape index: {}]
  %s8 = sld [smem:[#allocation0]]
  $region42: #{fcnet_our3_forward.1} parent=0
    _
  %s10 = ssub.s32 1, %s8
  %s11 = scalar_select 0, %s10, %s8
  $region1: #{fcnet_our3_forward.1} parent=0
    #allocation2 [shape = 'u8[200704]{0}', space=vmem, size = 0x31000, scoped, tag = 'input window, operand 1, single buffered']
    #allocation3 [shape = 's32[1]{0}', space=sflag, size = 0x4, scoped, tag = 'scoped memory for fcnet_our3_forward.1']
    #allocation4 [shape = 's32[1]{0}', space=sflag, size = 0x4, scoped, tag = 'scoped memory for fcnet_our3_forward.1']
    #allocation5 [shape = 'u8[1024]{0}', space=vmem, size = 0x400, scoped, tag = 'output window, operand 0, single buffered']
    %12 = vsyncpa [#allocation3], 0
    %13 = vsyncpa [#allocation4], 0
    // Predicated region
    $region2: #{fcnet_our3_forward.1} parent=1 // pred_check
      _
    $region3: #{fcnet_our3_forward.1} parent=1 // pred_check_branch
      %15 = sbr.rel (0) target = $region5
    $region4: #{fcnet_our3_forward.1} parent=1 // pred_region
      _
    $region5: #{fcnet_our3_forward.1} parent=1 // pred_fallthru
      _
    // Predicated region
    $region6: #{fcnet_our3_forward.1} parent=1 // pred_check
      _
    $region7: #{fcnet_our3_forward.1} parent=1 // pred_check_branch
      %17 = sbr.rel (0) target = $region9
    $region8: #{fcnet_our3_forward.1} parent=1 // pred_region
      %s19 = ssub.s32 6272, 6272
      %20 = vsyncadd [#allocation3], %s19
      %s21 = sshll.u32 [#allocation2], 4
      %s22 = int_to_ptr.vmem [resolvable:$true] %s21
      %27 = dma.hbm_to_vmem [thread:$0]  %s1, 6272, %s22, [#allocation3], 64, 64, 4
    $region9: #{fcnet_our3_forward.1} parent=1 // pred_fallthru
      _
    // Predicated region
    $region10: #{fcnet_our3_forward.1} parent=1 // pred_check
      _
    $region11: #{fcnet_our3_forward.1} parent=1 // pred_check_branch
      %29 = sbr.rel (0) target = $region13
    $region12: #{fcnet_our3_forward.1} parent=1 // pred_region
      _
    $region13: #{fcnet_our3_forward.1} parent=1 // pred_fallthru
      _
    // Predicated region
    $region14: #{fcnet_our3_forward.1} parent=1 // pred_check
      _
    $region15: #{fcnet_our3_forward.1} parent=1 // pred_check_branch
      %31 = sbr.rel (0) target = $region17
    $region16: #{fcnet_our3_forward.1} parent=1 // pred_region
      _
    $region17: #{fcnet_our3_forward.1} parent=1 // pred_fallthru
      _
    // Predicated region
    $region18: #{fcnet_our3_forward.1} parent=1 // pred_check
      _
    $region19: #{fcnet_our3_forward.1} parent=1 // pred_check_branch
      %33 = sbr.rel (0) target = $region21
    $region20: #{fcnet_our3_forward.1} parent=1 // pred_region
      _
    $region21: #{fcnet_our3_forward.1} parent=1 // pred_fallthru
      _
    // Predicated region
    $region22: #{fcnet_our3_forward.1} parent=1 // pred_check
      _
    $region23: #{fcnet_our3_forward.1} parent=1 // pred_check_branch
      %35 = sbr.rel (0) target = $region25
    $region24: #{fcnet_our3_forward.1} parent=1 // pred_region
      _
    $region25: #{fcnet_our3_forward.1} parent=1 // pred_fallthru
      _
    // Predicated region
    $region26: #{fcnet_our3_forward.1} parent=1 // pred_check
      _
    $region27: #{fcnet_our3_forward.1} parent=1 // pred_check_branch
      %37 = sbr.rel (0) target = $region29
    $region28: #{fcnet_our3_forward.1} parent=1 // pred_region
      _
    $region29: #{fcnet_our3_forward.1} parent=1 // pred_fallthru
      _
    // Predicated region
    $region30: #{fcnet_our3_forward.1} parent=1 // pred_check
      _
    $region31: #{fcnet_our3_forward.1} parent=1 // pred_check_branch
      %39 = sbr.rel (0) target = $region33
    $region32: #{fcnet_our3_forward.1} parent=1 // pred_region
      %40 = dma.done [#allocation3], 6272
    $region33: #{fcnet_our3_forward.1} parent=1 // pred_fallthru
      _
    %v42 = vld [vmem:[%s0] sm:$0xff]
    %v43 = vld [vmem:[%s0 + $0x8] sm:$0x3f]
    %v46 = vcombine.high %v42, %v42
    %v48 = vunpack.c.l.s4 1983009808
    %v49 = vunpack.c.0.s8 %v48
    %v50 = vlaneseq
    %v51 = vshrl.u32 %v50, 7
    %v52 = vsub.s32 %v49, %v51
    %v53 = vrot.slane %v42, %v52
    %v55 = vunpack.c.l.s4 1983009808
    %v56 = vunpack.c.0.s8 %v55
    %v57 = vlaneseq
    %v58 = vshrl.u32 %v57, 7
    %v59 = vsub.s32 %v56, %v58
    %v60 = vrot.slane %v46, %v59
    %v61 = vcombine.high %v53, %v53
    %v62 = vcombine.high %v60, %v60
    %v63 = vcombine.high %v43, %v43
    %v65 = vunpack.c.l.s4 1983009808
    %v66 = vunpack.c.0.s8 %v65
    %v67 = vlaneseq
    %v68 = vshrl.u32 %v67, 7
    %v69 = vsub.s32 %v66, %v68
    %v70 = vrot.slane %v43, %v69
    %v72 = vunpack.c.l.s4 1983009808
    %v73 = vunpack.c.0.s8 %v72
    %v74 = vlaneseq
    %v75 = vshrl.u32 %v74, 7
    %v76 = vsub.s32 %v73, %v75
    %v77 = vrot.slane %v63, %v76
    %v78 = vcombine.high %v70, %v70
    %v86 = vpack.c.bf16 %v53, %v53
    %v87 = vpack.c.bf16 %v61, %v61
    %v88 = vpack.c.bf16 %v60, %v60
    %v89 = vpack.c.bf16 %v62, %v62
    %v90 = vpack.c.bf16 %v70, %v70
    %v91 = vpack.c.bf16 %v78, %v78
    %v92 = vpack.c.bf16 %v77, %v77
    %v93 = vld [vmem:[#allocation2] sm:$0xf]
    %v94 = vld [vmem:[#allocation2 + $0x4] sm:$0xf]
    %v95 = vld [vmem:[#allocation2 + $0x8] sm:$0xf]
    %v96 = vld [vmem:[#allocation2 + $0xc] sm:$0xf]
    %v97 = vld [vmem:[#allocation2 + $0x10] sm:$0xf]
    %v98 = vld [vmem:[#allocation2 + $0x14] sm:$0xf]
    %v99 = vld [vmem:[#allocation2 + $0x18] sm:$0xf]
    %v100 = vld [vmem:[#allocation2 + $0x1c] sm:$0xf]
    %v101 = vld [vmem:[#allocation2 + $0x20] sm:$0xf]
    %v102 = vld [vmem:[#allocation2 + $0x24] sm:$0xf]
    %v103 = vld [vmem:[#allocation2 + $0x28] sm:$0xf]
    %v104 = vld [vmem:[#allocation2 + $0x2c] sm:$0xf]
    %v105 = vld [vmem:[#allocation2 + $0x30] sm:$0xf]
    %v106 = vld [vmem:[#allocation2 + $0x34] sm:$0xf]
    %v107 = vld [vmem:[#allocation2 + $0x38] sm:$0xf]
    %v108 = vld [vmem:[#allocation2 + $0x3c] sm:$0xf]
    %v109 = vld [vmem:[#allocation2 + $0x40] sm:$0xf]
    %v110 = vld [vmem:[#allocation2 + $0x44] sm:$0xf]
    %v111 = vld [vmem:[#allocation2 + $0x48] sm:$0xf]
    %v112 = vld [vmem:[#allocation2 + $0x4c] sm:$0xf]
    %v113 = vld [vmem:[#allocation2 + $0x50] sm:$0xf]
    %v114 = vld [vmem:[#allocation2 + $0x54] sm:$0xf]
    %v115 = vld [vmem:[#allocation2 + $0x58] sm:$0xf]
    %v116 = vld [vmem:[#allocation2 + $0x5c] sm:$0xf]
    %v117 = vld [vmem:[#allocation2 + $0x60] sm:$0xf]
    %v118 = vld [vmem:[#allocation2 + $0x64] sm:$0xf]
    %v119 = vld [vmem:[#allocation2 + $0x68] sm:$0xf]
    %v120 = vld [vmem:[#allocation2 + $0x6c] sm:$0xf]
    %v121 = vld [vmem:[#allocation2 + $0x70] sm:$0xf]
    %v122 = vld [vmem:[#allocation2 + $0x74] sm:$0xf]
    %v123 = vld [vmem:[#allocation2 + $0x78] sm:$0xf]
    %v124 = vld [vmem:[#allocation2 + $0x7c] sm:$0xf]
    %v125 = vld [vmem:[#allocation2 + $0x80] sm:$0xf]
    %v126 = vld [vmem:[#allocation2 + $0x84] sm:$0xf]
    %v127 = vld [vmem:[#allocation2 + $0x88] sm:$0xf]
    %v128 = vld [vmem:[#allocation2 + $0x8c] sm:$0xf]
    %v129 = vld [vmem:[#allocation2 + $0x90] sm:$0xf]
    %v130 = vld [vmem:[#allocation2 + $0x94] sm:$0xf]
    %v131 = vld [vmem:[#allocation2 + $0x98] sm:$0xf]
    %v132 = vld [vmem:[#allocation2 + $0x9c] sm:$0xf]
    %v133 = vld [vmem:[#allocation2 + $0xa0] sm:$0xf]
    %v134 = vld [vmem:[#allocation2 + $0xa4] sm:$0xf]
    %v135 = vld [vmem:[#allocation2 + $0xa8] sm:$0xf]
    %v136 = vld [vmem:[#allocation2 + $0xac] sm:$0xf]
    %v137 = vld [vmem:[#allocation2 + $0xb0] sm:$0xf]
    %v138 = vld [vmem:[#allocation2 + $0xb4] sm:$0xf]
    %v139 = vld [vmem:[#allocation2 + $0xb8] sm:$0xf]
    %v140 = vld [vmem:[#allocation2 + $0xbc] sm:$0xf]
    %v141 = vld [vmem:[#allocation2 + $0xc0] sm:$0xf]
    %v142 = vld [vmem:[#allocation2 + $0xc4] sm:$0xf]
    %v143 = vld [vmem:[#allocation2 + $0xc8] sm:$0xf]
    %v144 = vld [vmem:[#allocation2 + $0xcc] sm:$0xf]
    %v145 = vld [vmem:[#allocation2 + $0xd0] sm:$0xf]
    %v146 = vld [vmem:[#allocation2 + $0xd4] sm:$0xf]
    %v147 = vld [vmem:[#allocation2 + $0xd8] sm:$0xf]
    %v148 = vld [vmem:[#allocation2 + $0xdc] sm:$0xf]
    %v149 = vld [vmem:[#allocation2 + $0xe0] sm:$0xf]
    %v150 = vld [vmem:[#allocation2 + $0xe4] sm:$0xf]
    %v151 = vld [vmem:[#allocation2 + $0xe8] sm:$0xf]
    %v152 = vld [vmem:[#allocation2 + $0xec] sm:$0xf]
    %v153 = vld [vmem:[#allocation2 + $0xf0] sm:$0xf]
    %v154 = vld [vmem:[#allocation2 + $0xf4] sm:$0xf]
    %v155 = vld [vmem:[#allocation2 + $0xf8] sm:$0xf]
    %v156 = vld [vmem:[#allocation2 + $0xfc] sm:$0xf]
    %v157 = vld [vmem:[#allocation2 + $0x100] sm:$0xf]
    %v158 = vld [vmem:[#allocation2 + $0x104] sm:$0xf]
    %v159 = vld [vmem:[#allocation2 + $0x108] sm:$0xf]
    %v160 = vld [vmem:[#allocation2 + $0x10c] sm:$0xf]
    %v161 = vld [vmem:[#allocation2 + $0x110] sm:$0xf]
    %v162 = vld [vmem:[#allocation2 + $0x114] sm:$0xf]
    %v163 = vld [vmem:[#allocation2 + $0x118] sm:$0xf]
    %v164 = vld [vmem:[#allocation2 + $0x11c] sm:$0xf]
    %v165 = vld [vmem:[#allocation2 + $0x120] sm:$0xf]
    %v166 = vld [vmem:[#allocation2 + $0x124] sm:$0xf]
    %v167 = vld [vmem:[#allocation2 + $0x128] sm:$0xf]
    %v168 = vld [vmem:[#allocation2 + $0x12c] sm:$0xf]
    %v169 = vld [vmem:[#allocation2 + $0x130] sm:$0xf]
    %v170 = vld [vmem:[#allocation2 + $0x134] sm:$0xf]
    %v171 = vld [vmem:[#allocation2 + $0x138] sm:$0xf]
    %v172 = vld [vmem:[#allocation2 + $0x13c] sm:$0xf]
    %v173 = vld [vmem:[#allocation2 + $0x140] sm:$0xf]
    %v174 = vld [vmem:[#allocation2 + $0x144] sm:$0xf]
    %v175 = vld [vmem:[#allocation2 + $0x148] sm:$0xf]
    %v176 = vld [vmem:[#allocation2 + $0x14c] sm:$0xf]
    %v177 = vld [vmem:[#allocation2 + $0x150] sm:$0xf]
    %v178 = vld [vmem:[#allocation2 + $0x154] sm:$0xf]
    %v179 = vld [vmem:[#allocation2 + $0x158] sm:$0xf]
    %v180 = vld [vmem:[#allocation2 + $0x15c] sm:$0xf]
    %v181 = vld [vmem:[#allocation2 + $0x160] sm:$0xf]
    %v182 = vld [vmem:[#allocation2 + $0x164] sm:$0xf]
    %v183 = vld [vmem:[#allocation2 + $0x168] sm:$0xf]
    %v184 = vld [vmem:[#allocation2 + $0x16c] sm:$0xf]
    %v185 = vld [vmem:[#allocation2 + $0x170] sm:$0xf]
    %v186 = vld [vmem:[#allocation2 + $0x174] sm:$0xf]
    %v187 = vld [vmem:[#allocation2 + $0x178] sm:$0xf]
    %v188 = vld [vmem:[#allocation2 + $0x17c] sm:$0xf]
    %v189 = vld [vmem:[#allocation2 + $0x180] sm:$0xf]
    %v190 = vld [vmem:[#allocation2 + $0x184] sm:$0xf]
    %v191 = vld [vmem:[%s2] sm:$0x1]
    %v193 = vlaneseq
    %v194 = vshrl.u32 %v193, 7
    %v195 = vsub.s32 0, %v194
    %v196 = vrot.slane %v191, %v195
    %v296 = vunpack.c.l.b16 %v93
    %v297 = vunpack.c.l.b16 %v94
    %v298 = vunpack.c.l.b16 %v95
    %v299 = vunpack.c.l.b16 %v96
    %v300 = vunpack.c.l.b16 %v97
    %v301 = vunpack.c.l.b16 %v98
    %v302 = vunpack.c.l.b16 %v99
    %v303 = vunpack.c.l.b16 %v100
    %v304 = vunpack.c.l.b16 %v101
    %v305 = vunpack.c.l.b16 %v102
    %v306 = vunpack.c.l.b16 %v103
    %v307 = vunpack.c.l.b16 %v104
    %v308 = vunpack.c.l.b16 %v105
    %v309 = vunpack.c.l.b16 %v106
    %v310 = vunpack.c.l.b16 %v107
    %v311 = vunpack.c.l.b16 %v108
    %v312 = vunpack.c.l.b16 %v109
    %v313 = vunpack.c.l.b16 %v110
    %v314 = vunpack.c.l.b16 %v111
    %v315 = vunpack.c.l.b16 %v112
    %v316 = vunpack.c.l.b16 %v113
    %v317 = vunpack.c.l.b16 %v114
    %v318 = vunpack.c.l.b16 %v115
    %v319 = vunpack.c.l.b16 %v116
    %v320 = vunpack.c.l.b16 %v117
    %v321 = vunpack.c.l.b16 %v118
    %v322 = vunpack.c.l.b16 %v119
    %v323 = vunpack.c.l.b16 %v120
    %v324 = vunpack.c.l.b16 %v121
    %v325 = vunpack.c.l.b16 %v122
    %v326 = vunpack.c.l.b16 %v123
    %v327 = vunpack.c.l.b16 %v124
    %v328 = vunpack.c.l.b16 %v125
    %v329 = vunpack.c.l.b16 %v126
    %v330 = vunpack.c.l.b16 %v127
    %v331 = vunpack.c.l.b16 %v128
    %v332 = vunpack.c.l.b16 %v129
    %v333 = vunpack.c.l.b16 %v130
    %v334 = vunpack.c.l.b16 %v131
    %v335 = vunpack.c.l.b16 %v132
    %v336 = vunpack.c.l.b16 %v133
    %v337 = vunpack.c.l.b16 %v134
    %v338 = vunpack.c.l.b16 %v135
    %v339 = vunpack.c.l.b16 %v136
    %v340 = vunpack.c.l.b16 %v137
    %v341 = vunpack.c.l.b16 %v138
    %v342 = vunpack.c.l.b16 %v139
    %v343 = vunpack.c.l.b16 %v140
    %v344 = vunpack.c.l.b16 %v141
    %v345 = vunpack.c.l.b16 %v142
    %v346 = vunpack.c.l.b16 %v143
    %v347 = vunpack.c.l.b16 %v144
    %v348 = vunpack.c.l.b16 %v145
    %v349 = vunpack.c.l.b16 %v146
    %v350 = vunpack.c.l.b16 %v147
    %v351 = vunpack.c.l.b16 %v148
    %v352 = vunpack.c.l.b16 %v149
    %v353 = vunpack.c.l.b16 %v150
    %v354 = vunpack.c.l.b16 %v151
    %v355 = vunpack.c.l.b16 %v152
    %v356 = vunpack.c.l.b16 %v153
    %v357 = vunpack.c.l.b16 %v154
    %v358 = vunpack.c.l.b16 %v155
    %v359 = vunpack.c.l.b16 %v156
    %v360 = vunpack.c.l.b16 %v157
    %v361 = vunpack.c.l.b16 %v158
    %v362 = vunpack.c.l.b16 %v159
    %v363 = vunpack.c.l.b16 %v160
    %v364 = vunpack.c.l.b16 %v161
    %v365 = vunpack.c.l.b16 %v162
    %v366 = vunpack.c.l.b16 %v163
    %v367 = vunpack.c.l.b16 %v164
    %v368 = vunpack.c.l.b16 %v165
    %v369 = vunpack.c.l.b16 %v166
    %v370 = vunpack.c.l.b16 %v167
    %v371 = vunpack.c.l.b16 %v168
    %v372 = vunpack.c.l.b16 %v169
    %v373 = vunpack.c.l.b16 %v170
    %v374 = vunpack.c.l.b16 %v171
    %v375 = vunpack.c.l.b16 %v172
    %v376 = vunpack.c.l.b16 %v173
    %v377 = vunpack.c.l.b16 %v174
    %v378 = vunpack.c.l.b16 %v175
    %v379 = vunpack.c.l.b16 %v176
    %v380 = vunpack.c.l.b16 %v177
    %v381 = vunpack.c.l.b16 %v178
    %v382 = vunpack.c.l.b16 %v179
    %v383 = vunpack.c.l.b16 %v180
    %v384 = vunpack.c.l.b16 %v181
    %v385 = vunpack.c.l.b16 %v182
    %v386 = vunpack.c.l.b16 %v183
    %v387 = vunpack.c.l.b16 %v184
    %v388 = vunpack.c.l.b16 %v185
    %v389 = vunpack.c.l.b16 %v186
    %v390 = vunpack.c.l.b16 %v187
    %v391 = vunpack.c.l.b16 %v188
    %v392 = vunpack.c.l.b16 %v189
    %v393 = vunpack.c.l.b16 %v190
    %v394 = vpack.c.b16 %v297, %v296
    %v395 = vpack.c.b16 %v299, %v298
    %v396 = vpack.c.b16 %v301, %v300
    %v397 = vpack.c.b16 %v303, %v302
    %v398 = vpack.c.b16 %v305, %v304
    %v399 = vpack.c.b16 %v307, %v306
    %v400 = vpack.c.b16 %v309, %v308
    %v401 = vpack.c.b16 %v311, %v310
    %v402 = vpack.c.b16 %v313, %v312
    %v403 = vpack.c.b16 %v315, %v314
    %v404 = vpack.c.b16 %v317, %v316
    %v405 = vpack.c.b16 %v319, %v318
    %v406 = vpack.c.b16 %v321, %v320
    %v407 = vpack.c.b16 %v323, %v322
    %v408 = vpack.c.b16 %v325, %v324
    %v409 = vpack.c.b16 %v327, %v326
    %v410 = vpack.c.b16 %v329, %v328
    %v411 = vpack.c.b16 %v331, %v330
    %v412 = vpack.c.b16 %v333, %v332
    %v413 = vpack.c.b16 %v335, %v334
    %v414 = vpack.c.b16 %v337, %v336
    %v415 = vpack.c.b16 %v339, %v338
    %v416 = vpack.c.b16 %v341, %v340
    %v417 = vpack.c.b16 %v343, %v342
    %v418 = vpack.c.b16 %v345, %v344
    %v419 = vpack.c.b16 %v347, %v346
    %v420 = vpack.c.b16 %v349, %v348
    %v421 = vpack.c.b16 %v351, %v350
    %v422 = vpack.c.b16 %v353, %v352
    %v423 = vpack.c.b16 %v355, %v354
    %v424 = vpack.c.b16 %v357, %v356
    %v425 = vpack.c.b16 %v359, %v358
    %v426 = vpack.c.b16 %v361, %v360
    %v427 = vpack.c.b16 %v363, %v362
    %v428 = vpack.c.b16 %v365, %v364
    %v429 = vpack.c.b16 %v367, %v366
    %v430 = vpack.c.b16 %v369, %v368
    %v431 = vpack.c.b16 %v371, %v370
    %v432 = vpack.c.b16 %v373, %v372
    %v433 = vpack.c.b16 %v375, %v374
    %v434 = vpack.c.b16 %v377, %v376
    %v435 = vpack.c.b16 %v379, %v378
    %v436 = vpack.c.b16 %v381, %v380
    %v437 = vpack.c.b16 %v383, %v382
    %v438 = vpack.c.b16 %v385, %v384
    %v439 = vpack.c.b16 %v387, %v386
    %v440 = vpack.c.b16 %v389, %v388
    %v441 = vpack.c.b16 %v391, %v390
    %v442 = vpack.c.b16 %v393, %v392
    %vm492 = vcmask 130048
    %v494 = vsel %vm492, %v92, 0
    %496 = vmatprep.subr.bf16.mxu0 0
    %497 = vmatpush1.bf16.msra.mxu0 %v401
    %498 = vmatprep.subr.bf16.mxu0 0
    %499 = vmatpush1.bf16.msra.mxu0 %v400
    %500 = vmatprep.subr.bf16.mxu0 0
    %501 = vmatpush1.bf16.msra.mxu0 %v399
    %502 = vmatprep.subr.bf16.mxu0 0
    %503 = vmatpush1.bf16.msra.mxu0 %v398
    %504 = vmatprep.subr.bf16.mxu0 0
    %505 = vmatpush1.bf16.msra.mxu0 %v397
    %506 = vmatprep.subr.bf16.mxu0 0
    %507 = vmatpush1.bf16.msra.mxu0 %v396
    %508 = vmatprep.subr.bf16.mxu0 0
    %509 = vmatpush1.bf16.msra.mxu0 %v395
    %510 = vmatprep.subr.bf16.mxu0 0
    %511 = vmatpush1.bf16.msra.mxu0 %v394
    %512 = vmatprep.subr.bf16.mxu0 0
    %513 = vmatpush2.bf16.msra.mxu0 %v409
    %514 = vmatprep.subr.bf16.mxu0 0
    %515 = vmatpush2.bf16.msra.mxu0 %v408
    %516 = vmatprep.subr.bf16.mxu0 0
    %517 = vmatpush2.bf16.msra.mxu0 %v407
    %518 = vmatprep.subr.bf16.mxu0 0
    %519 = vmatpush2.bf16.msra.mxu0 %v406
    %520 = vmatprep.subr.bf16.mxu0 0
    %521 = vmatpush2.bf16.msra.mxu0 %v405
    %522 = vmatprep.subr.bf16.mxu0 0
    %523 = vmatpush2.bf16.msra.mxu0 %v404
    %524 = vmatprep.subr.bf16.mxu0 0
    %525 = vmatpush2.bf16.msra.mxu0 %v403
    %526 = vmatprep.subr.bf16.mxu0 0
    %527 = vmatpush2.bf16.msra.mxu0 %v402
    %528 = vmatprep.mubr.bf16.mxu0 %v87
    %529 = vmatmul.mubr.bf16.gmra.mxu0 %v86
    %v530 = vpop.f32.mrf.mxu0
    %v531 = vadd.f32 %v196, %v530
    %v532 = vpop.f32.mrf.mxu0
    %v533 = vpop.f32.mrf.mxu0
    %v534 = vpop.f32.mrf.mxu0
    %535 = vdwg.mxu0
    %536 = vmatprep.subr.bf16.mxu0 0
    %537 = vmatpush1.bf16.msra.mxu0 %v417
    %538 = vmatprep.subr.bf16.mxu0 0
    %539 = vmatpush1.bf16.msra.mxu0 %v416
    %540 = vmatprep.subr.bf16.mxu0 0
    %541 = vmatpush1.bf16.msra.mxu0 %v415
    %542 = vmatprep.subr.bf16.mxu0 0
    %543 = vmatpush1.bf16.msra.mxu0 %v414
    %544 = vmatprep.subr.bf16.mxu0 0
    %545 = vmatpush1.bf16.msra.mxu0 %v413
    %546 = vmatprep.subr.bf16.mxu0 0
    %547 = vmatpush1.bf16.msra.mxu0 %v412
    %548 = vmatprep.subr.bf16.mxu0 0
    %549 = vmatpush1.bf16.msra.mxu0 %v411
    %550 = vmatprep.subr.bf16.mxu0 0
    %551 = vmatpush1.bf16.msra.mxu0 %v410
    %552 = vmatprep.subr.bf16.mxu0 0
    %553 = vmatpush2.bf16.msra.mxu0 %v425
    %554 = vmatprep.subr.bf16.mxu0 0
    %555 = vmatpush2.bf16.msra.mxu0 %v424
    %556 = vmatprep.subr.bf16.mxu0 0
    %557 = vmatpush2.bf16.msra.mxu0 %v423
    %558 = vmatprep.subr.bf16.mxu0 0
    %559 = vmatpush2.bf16.msra.mxu0 %v422
    %560 = vmatprep.subr.bf16.mxu0 0
    %561 = vmatpush2.bf16.msra.mxu0 %v421
    %562 = vmatprep.subr.bf16.mxu0 0
    %563 = vmatpush2.bf16.msra.mxu0 %v420
    %564 = vmatprep.subr.bf16.mxu0 0
    %565 = vmatpush2.bf16.msra.mxu0 %v419
    %566 = vmatprep.subr.bf16.mxu0 0
    %567 = vmatpush2.bf16.msra.mxu0 %v418
    %568 = vmatprep.mubr.bf16.mxu0 %v89
    %569 = vmatmul.mubr.bf16.gmra.mxu0 %v88
    %v570 = vpop.f32.mrf.mxu0
    %v571 = vadd.f32 %v531, %v570
    %v572 = vpop.f32.mrf.mxu0
    %v573 = vpop.f32.mrf.mxu0
    %v574 = vpop.f32.mrf.mxu0
    %575 = vdwg.mxu0
    %576 = vmatprep.subr.bf16.mxu0 0
    %577 = vmatpush1.bf16.msra.mxu0 %v433
    %578 = vmatprep.subr.bf16.mxu0 0
    %579 = vmatpush1.bf16.msra.mxu0 %v432
    %580 = vmatprep.subr.bf16.mxu0 0
    %581 = vmatpush1.bf16.msra.mxu0 %v431
    %582 = vmatprep.subr.bf16.mxu0 0
    %583 = vmatpush1.bf16.msra.mxu0 %v430
    %584 = vmatprep.subr.bf16.mxu0 0
    %585 = vmatpush1.bf16.msra.mxu0 %v429
    %586 = vmatprep.subr.bf16.mxu0 0
    %587 = vmatpush1.bf16.msra.mxu0 %v428
    %588 = vmatprep.subr.bf16.mxu0 0
    %589 = vmatpush1.bf16.msra.mxu0 %v427
    %590 = vmatprep.subr.bf16.mxu0 0
    %591 = vmatpush1.bf16.msra.mxu0 %v426
    %592 = vmatprep.subr.bf16.mxu0 0
    %593 = vmatpush2.bf16.msra.mxu0 %v441
    %594 = vmatprep.subr.bf16.mxu0 0
    %595 = vmatpush2.bf16.msra.mxu0 %v440
    %596 = vmatprep.subr.bf16.mxu0 0
    %597 = vmatpush2.bf16.msra.mxu0 %v439
    %598 = vmatprep.subr.bf16.mxu0 0
    %599 = vmatpush2.bf16.msra.mxu0 %v438
    %600 = vmatprep.subr.bf16.mxu0 0
    %601 = vmatpush2.bf16.msra.mxu0 %v437
    %602 = vmatprep.subr.bf16.mxu0 0
    %603 = vmatpush2.bf16.msra.mxu0 %v436
    %604 = vmatprep.subr.bf16.mxu0 0
    %605 = vmatpush2.bf16.msra.mxu0 %v435
    %606 = vmatprep.subr.bf16.mxu0 0
    %607 = vmatpush2.bf16.msra.mxu0 %v434
    %608 = vmatprep.mubr.bf16.mxu0 %v91
    %609 = vmatmul.mubr.bf16.gmra.mxu0 %v90
    %v610 = vpop.f32.mrf.mxu0
    %v611 = vadd.f32 %v571, %v610
    %v612 = vpop.f32.mrf.mxu0
    %v613 = vpop.f32.mrf.mxu0
    %v614 = vpop.f32.mrf.mxu0
    %615 = vdwg.mxu0
    %616 = vmatprep.subr.bf16.mxu0 0
    %617 = vmatpush1.bf16.msra.mxu0 0
    %618 = vmatprep.subr.bf16.mxu0 0
    %619 = vmatpush1.bf16.msra.mxu0 0
    %620 = vmatprep.subr.bf16.mxu0 0
    %621 = vmatpush1.bf16.msra.mxu0 0
    %622 = vmatprep.subr.bf16.mxu0 0
    %623 = vmatpush1.bf16.msra.mxu0 0
    %624 = vmatprep.subr.bf16.mxu0 0
    %625 = vmatpush1.bf16.msra.mxu0 0
    %626 = vmatprep.subr.bf16.mxu0 0
    %627 = vmatpush1.bf16.msra.mxu0 0
    %628 = vmatprep.subr.bf16.mxu0 0
    %629 = vmatpush1.bf16.msra.mxu0 0
    %630 = vmatprep.subr.bf16.mxu0 0
    %631 = vmatpush1.bf16.msra.mxu0 %v442
    %632 = vmatprep.subr.bf16.mxu0 0
    %633 = vmatpush2.bf16.msra.mxu0 0
    %634 = vmatprep.subr.bf16.mxu0 0
    %635 = vmatpush2.bf16.msra.mxu0 0
    %636 = vmatprep.subr.bf16.mxu0 0
    %637 = vmatpush2.bf16.msra.mxu0 0
    %638 = vmatprep.subr.bf16.mxu0 0
    %639 = vmatpush2.bf16.msra.mxu0 0
    %640 = vmatprep.subr.bf16.mxu0 0
    %641 = vmatpush2.bf16.msra.mxu0 0
    %642 = vmatprep.subr.bf16.mxu0 0
    %643 = vmatpush2.bf16.msra.mxu0 0
    %644 = vmatprep.subr.bf16.mxu0 0
    %645 = vmatpush2.bf16.msra.mxu0 0
    %646 = vmatprep.subr.bf16.mxu0 0
    %647 = vmatpush2.bf16.msra.mxu0 0
    %648 = vmatprep.mubr.bf16.mxu0 0
    %649 = vmatmul.mubr.bf16.gmra.mxu0 %v494
    %v650 = vpop.f32.mrf.mxu0
    %v651 = vadd.f32 %v611, %v650
    %v652 = vpop.f32.mrf.mxu0
    %v653 = vpop.f32.mrf.mxu0
    %v654 = vpop.f32.mrf.mxu0
    %655 = vdwg.mxu0
    %v656 = vmul.f32 %v651, 0.103950106
    %v657 = vadd.f32 %v656, 1.0
    %v658 = vrcp.pop %v657
    %v659 = vmul.f32 %v658, 0.43
    %v660 = vsub.f32 0.53, %v659
    %v661 = vmul.f32 %v651, %v660
    %v662 = vpack.c.bf16 %v661, %v661
    %v663 = vld [vmem:[%s3] sm:$0xf]
    %v664 = vld [vmem:[%s3 + $0x4] sm:$0xf]
    %v665 = vld [vmem:[%s3 + $0x8] sm:$0xf]
    %v666 = vld [vmem:[%s3 + $0xc] sm:$0xf]
    %v667 = vld [vmem:[%s3 + $0x10] sm:$0xf]
    %v668 = vld [vmem:[%s3 + $0x14] sm:$0xf]
    %v669 = vld [vmem:[%s3 + $0x18] sm:$0xf]
    %v670 = vld [vmem:[%s3 + $0x1c] sm:$0xf]
    %v671 = vld [vmem:[%s3 + $0x20] sm:$0xf]
    %v672 = vld [vmem:[%s3 + $0x24] sm:$0xf]
    %v673 = vld [vmem:[%s3 + $0x28] sm:$0xf]
    %v674 = vld [vmem:[%s3 + $0x2c] sm:$0xf]
    %v675 = vld [vmem:[%s3 + $0x30] sm:$0xf]
    %v676 = vld [vmem:[%s3 + $0x34] sm:$0xf]
    %v677 = vld [vmem:[%s3 + $0x38] sm:$0xf]
    %v678 = vld [vmem:[%s3 + $0x3c] sm:$0xf]
    %v679 = vld [vmem:[%s4] sm:$0x1]
    %v681 = vlaneseq
    %v682 = vshrl.u32 %v681, 7
    %v683 = vsub.s32 0, %v682
    %v684 = vrot.slane %v679, %v683
    %v702 = vunpack.c.l.b16 %v663
    %v703 = vunpack.c.l.b16 %v664
    %v704 = vunpack.c.l.b16 %v665
    %v705 = vunpack.c.l.b16 %v666
    %v706 = vunpack.c.l.b16 %v667
    %v707 = vunpack.c.l.b16 %v668
    %v708 = vunpack.c.l.b16 %v669
    %v709 = vunpack.c.l.b16 %v670
    %v710 = vunpack.c.l.b16 %v671
    %v711 = vunpack.c.l.b16 %v672
    %v712 = vunpack.c.l.b16 %v673
    %v713 = vunpack.c.l.b16 %v674
    %v714 = vunpack.c.l.b16 %v675
    %v715 = vunpack.c.l.b16 %v676
    %v716 = vunpack.c.l.b16 %v677
    %v717 = vunpack.c.l.b16 %v678
    %v718 = vpack.c.b16 %v703, %v702
    %v719 = vpack.c.b16 %v705, %v704
    %v720 = vpack.c.b16 %v707, %v706
    %v721 = vpack.c.b16 %v709, %v708
    %v722 = vpack.c.b16 %v711, %v710
    %v723 = vpack.c.b16 %v713, %v712
    %v724 = vpack.c.b16 %v715, %v714
    %v725 = vpack.c.b16 %v717, %v716
    %734 = vmatprep.subr.bf16.mxu0 0
    %735 = vmatpush1.bf16.msra.mxu0 %v725
    %736 = vmatprep.subr.bf16.mxu0 0
    %737 = vmatpush1.bf16.msra.mxu0 %v724
    %738 = vmatprep.subr.bf16.mxu0 0
    %739 = vmatpush1.bf16.msra.mxu0 %v723
    %740 = vmatprep.subr.bf16.mxu0 0
    %741 = vmatpush1.bf16.msra.mxu0 %v722
    %742 = vmatprep.subr.bf16.mxu0 0
    %743 = vmatpush1.bf16.msra.mxu0 %v721
    %744 = vmatprep.subr.bf16.mxu0 0
    %745 = vmatpush1.bf16.msra.mxu0 %v720
    %746 = vmatprep.subr.bf16.mxu0 0
    %747 = vmatpush1.bf16.msra.mxu0 %v719
    %748 = vmatprep.subr.bf16.mxu0 0
    %749 = vmatpush1.bf16.msra.mxu0 %v718
    %750 = vmatprep.subr.bf16.mxu0 0
    %751 = vmatpush2.bf16.msra.mxu0 0
    %752 = vmatprep.subr.bf16.mxu0 0
    %753 = vmatpush2.bf16.msra.mxu0 0
    %754 = vmatprep.subr.bf16.mxu0 0
    %755 = vmatpush2.bf16.msra.mxu0 0
    %756 = vmatprep.subr.bf16.mxu0 0
    %757 = vmatpush2.bf16.msra.mxu0 0
    %758 = vmatprep.subr.bf16.mxu0 0
    %759 = vmatpush2.bf16.msra.mxu0 0
    %760 = vmatprep.subr.bf16.mxu0 0
    %761 = vmatpush2.bf16.msra.mxu0 0
    %762 = vmatprep.subr.bf16.mxu0 0
    %763 = vmatpush2.bf16.msra.mxu0 0
    %764 = vmatprep.subr.bf16.mxu0 0
    %765 = vmatpush2.bf16.msra.mxu0 0
    %766 = vmatprep.mubr.bf16.mxu0 0
    %767 = vmatmul.mubr.bf16.gmra.mxu0 %v662
    %v768 = vpop.f32.mrf.mxu0
    %v769 = vadd.f32 %v684, %v768
    %v770 = vpop.f32.mrf.mxu0
    %v771 = vpop.f32.mrf.mxu0
    %v772 = vpop.f32.mrf.mxu0
    %773 = vdwg.mxu0
    %v774 = vmul.f32 %v769, 0.103950106
    %v775 = vadd.f32 %v774, 1.0
    %v776 = vrcp.pop %v775
    %v777 = vmul.f32 %v776, 0.43
    %v778 = vsub.f32 0.53, %v777
    %v779 = vmul.f32 %v769, %v778
    %v780 = vpack.c.bf16 %v779, %v779
    %v781 = vld [vmem:[%s5] sm:$0xf]
    %v782 = vld [vmem:[%s5 + $0x4] sm:$0xf]
    %v783 = vld [vmem:[%s5 + $0x8] sm:$0xf]
    %v784 = vld [vmem:[%s5 + $0xc] sm:$0xf]
    %v785 = vld [vmem:[%s5 + $0x10] sm:$0xf]
    %v786 = vld [vmem:[%s5 + $0x14] sm:$0xf]
    %v787 = vld [vmem:[%s5 + $0x18] sm:$0xf]
    %v788 = vld [vmem:[%s5 + $0x1c] sm:$0xf]
    %v789 = vld [vmem:[%s6] sm:$0x1]
    %v791 = vlaneseq
    %v792 = vshrl.u32 %v791, 7
    %v793 = vsub.s32 0, %v792
    %v794 = vrot.slane %v789, %v793
    %v804 = vunpack.c.l.b16 %v781
    %v805 = vunpack.c.l.b16 %v782
    %v806 = vunpack.c.l.b16 %v783
    %v807 = vunpack.c.l.b16 %v784
    %v808 = vunpack.c.l.b16 %v785
    %v809 = vunpack.c.l.b16 %v786
    %v810 = vunpack.c.l.b16 %v787
    %v811 = vunpack.c.l.b16 %v788
    %v812 = vpack.c.b16 %v805, %v804
    %v813 = vpack.c.b16 %v807, %v806
    %v814 = vpack.c.b16 %v809, %v808
    %v815 = vpack.c.b16 %v811, %v810
    %vm820 = vcmask 523264
    %v822 = vsel %vm820, %v780, 0
    %824 = vmatprep.subr.bf16.mxu0 0
    %825 = vmatpush1.bf16.msra.mxu0 0
    %826 = vmatprep.subr.bf16.mxu0 0
    %827 = vmatpush1.bf16.msra.mxu0 0
    %828 = vmatprep.subr.bf16.mxu0 0
    %829 = vmatpush1.bf16.msra.mxu0 0
    %830 = vmatprep.subr.bf16.mxu0 0
    %831 = vmatpush1.bf16.msra.mxu0 0
    %832 = vmatprep.subr.bf16.mxu0 0
    %833 = vmatpush1.bf16.msra.mxu0 %v815
    %834 = vmatprep.subr.bf16.mxu0 0
    %835 = vmatpush1.bf16.msra.mxu0 %v814
    %836 = vmatprep.subr.bf16.mxu0 0
    %837 = vmatpush1.bf16.msra.mxu0 %v813
    %838 = vmatprep.subr.bf16.mxu0 0
    %839 = vmatpush1.bf16.msra.mxu0 %v812
    %840 = vmatprep.subr.bf16.mxu0 0
    %841 = vmatpush2.bf16.msra.mxu0 0
    %842 = vmatprep.subr.bf16.mxu0 0
    %843 = vmatpush2.bf16.msra.mxu0 0
    %844 = vmatprep.subr.bf16.mxu0 0
    %845 = vmatpush2.bf16.msra.mxu0 0
    %846 = vmatprep.subr.bf16.mxu0 0
    %847 = vmatpush2.bf16.msra.mxu0 0
    %848 = vmatprep.subr.bf16.mxu0 0
    %849 = vmatpush2.bf16.msra.mxu0 0
    %850 = vmatprep.subr.bf16.mxu0 0
    %851 = vmatpush2.bf16.msra.mxu0 0
    %852 = vmatprep.subr.bf16.mxu0 0
    %853 = vmatpush2.bf16.msra.mxu0 0
    %854 = vmatprep.subr.bf16.mxu0 0
    %855 = vmatpush2.bf16.msra.mxu0 0
    %856 = vmatprep.mubr.bf16.mxu0 0
    %857 = vmatmul.mubr.bf16.gmra.mxu0 %v822
    %v858 = vpop.f32.mrf.mxu0
    %v859 = vadd.f32 %v794, %v858
    %v860 = vpop.f32.mrf.mxu0
    %v861 = vpop.f32.mrf.mxu0
    %v862 = vpop.f32.mrf.mxu0
    %863 = vdwg.mxu0
    %vm864 = vcmask 74752
    %v865 = vsel %vm864, %v859, -inf
    %866 = vmax.xlane.f32.xlu0 %v865
    %v867 = vpop.xlane.xlu0 %866
    %v868 = vsub.f32 %v859, %v867
    %v869 = vmul.f32 %v868, 1.442695
    %v870 = vpow.pop %v869
    %v871 = vsel %vm864, %v870, 0.0
    %872 = vadd.xlane.f32.xlu0 %v871
    %v873 = vpop.xlane.xlu0 %872
    %v874 = vlog2.pop %v873
    %v875 = vmul.f32 %v874, 0.6931472
    %v876 = vsub.f32 %v868, %v875
    %877 = vst.msk [vmem:[#allocation5] sm:$0x3] %vm864, %v876
    // Predicated region
    $region34: #{fcnet_our3_forward.1} parent=1 // pred_check
      _
    $region35: #{fcnet_our3_forward.1} parent=1 // pred_check_branch
      %879 = sbr.rel (0) target = $region37
    $region36: #{fcnet_our3_forward.1} parent=1 // pred_region
      %s881 = ssub.s32 32, 32
      %882 = vsyncadd [#allocation4], %s881
      %s884 = sshll.u32 [#allocation5], 4
      %s885 = int_to_ptr.vmem [resolvable:$true] %s884
      %887 = dma.vmem_to_hbm [thread:$0]  %s885, 32, %s7, [#allocation4]
    $region37: #{fcnet_our3_forward.1} parent=1 // pred_fallthru
      _
    // Predicated region
    $region38: #{fcnet_our3_forward.1} parent=1 // pred_check
      _
    $region39: #{fcnet_our3_forward.1} parent=1 // pred_check_branch
      %889 = sbr.rel (0) target = $region41
    $region40: #{fcnet_our3_forward.1} parent=1 // pred_region
      %890 = dma.done [#allocation4], 32
    $region41: #{fcnet_our3_forward.1} parent=1 // pred_fallthru
      _
    %891 = vsyncpa [#allocation3], 1
    %892 = vsyncpa [#allocation4], 1

</llo_original>
